<compile_context>
chip_gen: v5e
topology: v5e:2x2
jax: 0.10.0
libtpu: 0.0.40
codegen_flags: <defaults>
</compile_context>

<pallas_src>
import jax
import jax.numpy as jnp
from jax import lax
from jax.experimental import pallas as pl
from jax.experimental.pallas import tpu as pltpu

IN_CHANNELS = 3
OUT_CHANNELS = 16
KERNEL_SIZE = 3


def _conv_post_kernel(w_ref, b_ref, s_ref, p_ref, o_ref):
    """One grid step processes `bn` batch elements.

    w_ref: (Cout, Kdim) bf16  -- conv weights, resident across the grid
    b_ref: (Cout, 1)    f32   -- conv bias
    s_ref: (Cout, 1)    f32   -- sum_tensor (per channel)
    p_ref: (bn, Kdim, L) bf16 -- im2col patches for bn batch elements
    o_ref: (bn, Cout, L) f32  -- final-layout output
    """
    w = w_ref[...]
    b = b_ref[...]
    s = s_ref[...]
    bn = p_ref.shape[0]
    for i in range(bn):  # static, small unroll
        # (Cout, Kdim) @ (Kdim, L): bf16 operands, f32 MXU accumulation.
        acc = jnp.dot(w, p_ref[i], preferred_element_type=jnp.float32)
        acc = acc + b                                   # conv bias
        acc = jnp.where(acc > 0.0, acc, 0.2 * acc)      # LeakyReLU(0.2)
        acc = acc + s                                   # + sum_tensor[c]
        acc = jnp.clip(acc, -1.0, 1.0)                  # clamp to [-1, 1]
        inner = 0.7978845608 * acc * (1.0 + 0.044715 * acc * acc)
        acc = acc * 0.5 * (1.0 + jnp.tanh(inner))       # tanh-approx GELU
        o_ref[i] = acc                                  # f32, final layout


def conv3d_post_process(x, w, b, sum_tensor, *, max_batch_tile=16,
                        target_patch_bytes=4 * 1024 * 1024):
    N, C, D, H, W = x.shape
    K = KERNEL_SIZE
    Do, Ho, Wo = D - K + 1, H - K + 1, W - K + 1
    Cout = w.shape[0]
    L = Do * Ho * Wo
    Kdim = C * K * K * K

    # Emulate .half(): quantize input & params through fp16; store the matmul
    # operands as bf16 so the MXU consumes them directly (f32 accumulate).
    xq = x.astype(jnp.float16).astype(jnp.bfloat16)
    wq = w.astype(jnp.float16).astype(jnp.bfloat16)
    bq = b.astype(jnp.float16).astype(jnp.float32)
    sq = sum_tensor.astype(jnp.float16).astype(jnp.float32)

    # im2col in glue -> (N, Kdim, L) bf16.  Row order (c, kd, kh, kw) matches
    # torch Conv3d weight flattening.  Keeping N leading means the kernel's
    # output is already in NC(DHW) order: the final reshape is metadata-only.
    slices = []
    for kd in range(K):
        for kh in range(K):
            for kw in range(K):
                slices.append(xq[:, :, kd:kd + Do, kh:kh + Ho, kw:kw + Wo])
    pat = jnp.stack(slices, axis=2)          # (N, C, K^3, Do, Ho, Wo)
    pat = pat.reshape(N, Kdim, L)            # (N, 81, L) bf16

    # Batch tile: big enough to amortize per-grid-step overhead, small enough
    # to stay well inside every generation's default scoped VMEM (v5e 16 MiB,
    # v6e/v7x 32 MiB) with double buffering.
    per_batch_bytes = Kdim * L * 2
    bn = max(1, min(N, max_batch_tile,
                    target_patch_bytes // max(1, per_batch_bytes)))
    while N % bn != 0 and bn > 1:            # prefer a divisor of N (no pad)
        bn -= 1
    Npad = ((N + bn - 1) // bn) * bn
    if Npad != N:
        pat = jnp.pad(pat, ((0, Npad - N), (0, 0), (0, 0)))

    w2d = wq.reshape(Cout, Kdim)             # (16, 81) bf16
    b2d = bq.reshape(Cout, 1)                # (16, 1)  f32
    s2d = sq.reshape(Cout, 1)                # (16, 1)  f32

    out = pl.pallas_call(
        _conv_post_kernel,
        out_shape=jax.ShapeDtypeStruct((Npad, Cout, L), jnp.float32),
        grid=(Npad // bn,),
        in_specs=[
            pl.BlockSpec((Cout, Kdim), lambda i: (0, 0)),      # weights
            pl.BlockSpec((Cout, 1), lambda i: (0, 0)),         # bias
            pl.BlockSpec((Cout, 1), lambda i: (0, 0)),         # sum_tensor
            pl.BlockSpec((bn, Kdim, L), lambda i: (i, 0, 0)),  # patch block
        ],
        out_specs=pl.BlockSpec((bn, Cout, L), lambda i: (i, 0, 0)),
        compiler_params=pltpu.CompilerParams(
            dimension_semantics=("parallel",)),
    )(w2d, b2d, s2d, pat)

    # Metadata-only reshape to NCDHW; module returns float32.
    out = out[:N].reshape(N, Cout, Do, Ho, Wo)
    return out


def reference(x, w, b, sum_tensor):
    """Pure-JAX reference matching the module semantics (half-quantized IO)."""
    xq = x.astype(jnp.float16).astype(jnp.bfloat16).astype(jnp.float32)
    wq = w.astype(jnp.float16).astype(jnp.bfloat16).astype(jnp.float32)
    bq = b.astype(jnp.float16).astype(jnp.float32)
    sq = sum_tensor.astype(jnp.float16).astype(jnp.float32)
    y = lax.conv_general_dilated(
        xq, wq, window_strides=(1, 1, 1), padding="VALID",
        dimension_numbers=("NCDHW", "OIDHW", "NCDHW"))
    y = y + bq.reshape(1, -1, 1, 1, 1)
    y = jnp.where(y > 0.0, y, 0.2 * y)
    y = y + sq.reshape(1, -1, 1, 1, 1)
    y = jnp.clip(y, -1.0, 1.0)
    inner = 0.7978845608 * y * (1.0 + 0.044715 * y * y)
    y = y * 0.5 * (1.0 + jnp.tanh(inner))
    # Module stores the post-processed tensor in half, then returns .float().
    return y.astype(jnp.float16).astype(jnp.float32)


if __name__ == "__main__":
    key = jax.random.PRNGKey(0)
    kx, kw, kb, ks = jax.random.split(key, 4)

    # Small deterministic example: batch=2, C_in=3, D=H=W=8 -> out (2,16,6,6,6)
    N, D, H, W = 2, 8, 8, 8
    x = jax.random.normal(kx, (N, IN_CHANNELS, D, H, W), dtype=jnp.float32)

    fan_in = IN_CHANNELS * KERNEL_SIZE ** 3
    bound = 1.0 / (fan_in ** 0.5)
    w = jax.random.uniform(
        kw, (OUT_CHANNELS, IN_CHANNELS, KERNEL_SIZE, KERNEL_SIZE, KERNEL_SIZE),
        minval=-bound, maxval=bound, dtype=jnp.float32)
    b = jax.random.uniform(kb, (OUT_CHANNELS,), minval=-bound, maxval=bound,
                           dtype=jnp.float32)
    sum_tensor = jax.random.normal(ks, (OUT_CHANNELS, 1, 1, 1),
                                   dtype=jnp.float32)

    run = jax.jit(conv3d_post_process)
    out = jax.block_until_ready(run(x, w, b, sum_tensor))
    ref = jax.block_until_ready(reference(x, w, b, sum_tensor))

    assert out.shape == (N, OUT_CHANNELS, D - 2, H - 2, W - 2), out.shape
    max_err = float(jnp.max(jnp.abs(out - ref)))
    # Kernel skips the final fp16 storage round (<~2.5e-4) and uses bf16 MXU
    # inputs identical to the reference quantization, so 5e-3 is ample.
    assert max_err < 5e-3, f"max_err={max_err}"
    print("KERNEL_OK")
</pallas_src>

<mosaic_0001>
module attributes {stable_mosaic.version = 11 : i64} {
  func.func @_conv_post_kernel(%arg0: i32, %arg1: memref<16x81xbf16, #tpu.memory_space<vmem>>, %arg2: memref<16x1xf32, #tpu.memory_space<vmem>>, %arg3: memref<16x1xf32, #tpu.memory_space<vmem>>, %arg4: memref<2x81x216xbf16, #tpu.memory_space<vmem>>, %arg5: memref<2x16x216xf32, #tpu.memory_space<vmem>>) attributes {dimension_semantics = [#tpu.dimension_semantics<parallel>], iteration_bounds = array<i64: 1>, scalar_prefetch = 0 : i64, scratch_operands = 0 : i64, tpu.core_type = #tpu.core_type<tc>, window_params = [{pipeline_mode = #tpu.pipeline_mode<synchronous>, transform_indices = @transform_0, window_bounds = array<i64: 16, 81>}, {pipeline_mode = #tpu.pipeline_mode<synchronous>, transform_indices = @transform_1, window_bounds = array<i64: 16, 1>}, {pipeline_mode = #tpu.pipeline_mode<synchronous>, transform_indices = @transform_2, window_bounds = array<i64: 16, 1>}, {transform_indices = @transform_3, window_bounds = array<i64: 2, 81, 216>}, {transform_indices = @transform_4, window_bounds = array<i64: 2, 16, 216>}]} {
    %c0 = arith.constant 0 : index
    %c0_0 = arith.constant 0 : index
    %0 = vector.load %arg1[%c0, %c0_0] : memref<16x81xbf16, #tpu.memory_space<vmem>>, vector<16x81xbf16>
    %c0_1 = arith.constant 0 : index
    %c0_2 = arith.constant 0 : index
    %1 = vector.load %arg2[%c0_1, %c0_2] : memref<16x1xf32, #tpu.memory_space<vmem>>, vector<16x1xf32>
    %c0_3 = arith.constant 0 : index
    %c0_4 = arith.constant 0 : index
    %2 = vector.load %arg3[%c0_3, %c0_4] : memref<16x1xf32, #tpu.memory_space<vmem>>, vector<16x1xf32>
    %c0_5 = arith.constant 0 : index
    %c0_6 = arith.constant 0 : index
    %c0_7 = arith.constant 0 : index
    %3 = vector.load %arg4[%c0_5, %c0_6, %c0_7] : memref<2x81x216xbf16, #tpu.memory_space<vmem>>, vector<1x81x216xbf16>
    %4 = vector.shape_cast %3 : vector<1x81x216xbf16> to vector<81x216xbf16>
    %cst = arith.constant dense<0.000000e+00> : vector<16x216xf32>
    %5 = tpu.matmul %0, %4, %cst {dimension_numbers = #tpu.dot_dimension_numbers<[1], [0], [0], [1], [0, 0, 1, 1], [], []>} : vector<16x81xbf16>, vector<81x216xbf16>, vector<16x216xf32> -> vector<16x216xf32>
    %6 = vector.broadcast %1 : vector<16x1xf32> to vector<16x216xf32>
    %7 = arith.addf %5, %6 : vector<16x216xf32>
    %cst_8 = arith.constant 0.000000e+00 : f32
    %8 = vector.broadcast %cst_8 : f32 to vector<16x216xf32>
    %9 = arith.cmpf ogt, %7, %8 : vector<16x216xf32>
    %cst_9 = arith.constant 2.000000e-01 : f32
    %10 = vector.broadcast %cst_9 : f32 to vector<16x216xf32>
    %11 = arith.mulf %10, %7 : vector<16x216xf32>
    %12 = arith.select %9, %7, %11 : vector<16x216xi1>, vector<16x216xf32>
    %13 = vector.broadcast %2 : vector<16x1xf32> to vector<16x216xf32>
    %14 = arith.addf %12, %13 : vector<16x216xf32>
    %cst_10 = arith.constant -1.000000e+00 : f32
    %cst_11 = arith.constant 1.000000e+00 : f32
    %15 = vector.broadcast %cst_10 : f32 to vector<16x216xf32>
    %16 = arith.maximumf %15, %14 : vector<16x216xf32>
    %17 = vector.broadcast %cst_11 : f32 to vector<16x216xf32>
    %18 = arith.minimumf %17, %16 : vector<16x216xf32>
    %cst_12 = arith.constant 0.797884583 : f32
    %19 = vector.broadcast %cst_12 : f32 to vector<16x216xf32>
    %20 = arith.mulf %19, %18 : vector<16x216xf32>
    %cst_13 = arith.constant 4.471500e-02 : f32
    %21 = vector.broadcast %cst_13 : f32 to vector<16x216xf32>
    %22 = arith.mulf %21, %18 : vector<16x216xf32>
    %23 = arith.mulf %22, %18 : vector<16x216xf32>
    %cst_14 = arith.constant 1.000000e+00 : f32
    %24 = vector.broadcast %cst_14 : f32 to vector<16x216xf32>
    %25 = arith.addf %24, %23 : vector<16x216xf32>
    %26 = arith.mulf %20, %25 : vector<16x216xf32>
    %cst_15 = arith.constant 5.000000e-01 : f32
    %27 = vector.broadcast %cst_15 : f32 to vector<16x216xf32>
    %28 = arith.mulf %18, %27 : vector<16x216xf32>
    %29 = math.tanh %26 : vector<16x216xf32>
    %cst_16 = arith.constant 1.000000e+00 : f32
    %30 = vector.broadcast %cst_16 : f32 to vector<16x216xf32>
    %31 = arith.addf %30, %29 : vector<16x216xf32>
    %32 = arith.mulf %28, %31 : vector<16x216xf32>
    %c0_17 = arith.constant 0 : index
    %c0_18 = arith.constant 0 : index
    %c0_19 = arith.constant 0 : index
    %33 = vector.load %arg5[%c0_17, %c0_18, %c0_19] : memref<2x16x216xf32, #tpu.memory_space<vmem>>, vector<1x16x216xf32>
    %34 = vector.shape_cast %33 : vector<1x16x216xf32> to vector<16x216xf32>
    %35 = vector.shape_cast %32 : vector<16x216xf32> to vector<1x16x216xf32>
    tpu.vector_store %arg5[%c0_17, %c0_18, %c0_19], %35 {strides = array<i32>} : memref<2x16x216xf32, #tpu.memory_space<vmem>>, vector<1x16x216xf32>,
    %c1 = arith.constant 1 : index
    %c0_20 = arith.constant 0 : index
    %c0_21 = arith.constant 0 : index
    %36 = vector.load %arg4[%c1, %c0_20, %c0_21] : memref<2x81x216xbf16, #tpu.memory_space<vmem>>, vector<1x81x216xbf16>
    %37 = vector.shape_cast %36 : vector<1x81x216xbf16> to vector<81x216xbf16>
    %cst_22 = arith.constant dense<0.000000e+00> : vector<16x216xf32>
    %38 = tpu.matmul %0, %37, %cst_22 {dimension_numbers = #tpu.dot_dimension_numbers<[1], [0], [0], [1], [0, 0, 1, 1], [], []>} : vector<16x81xbf16>, vector<81x216xbf16>, vector<16x216xf32> -> vector<16x216xf32>
    %39 = vector.broadcast %1 : vector<16x1xf32> to vector<16x216xf32>
    %40 = arith.addf %38, %39 : vector<16x216xf32>
    %cst_23 = arith.constant 0.000000e+00 : f32
    %41 = vector.broadcast %cst_23 : f32 to vector<16x216xf32>
    %42 = arith.cmpf ogt, %40, %41 : vector<16x216xf32>
    %cst_24 = arith.constant 2.000000e-01 : f32
    %43 = vector.broadcast %cst_24 : f32 to vector<16x216xf32>
    %44 = arith.mulf %43, %40 : vector<16x216xf32>
    %45 = arith.select %42, %40, %44 : vector<16x216xi1>, vector<16x216xf32>
    %46 = vector.broadcast %2 : vector<16x1xf32> to vector<16x216xf32>
    %47 = arith.addf %45, %46 : vector<16x216xf32>
    %cst_25 = arith.constant -1.000000e+00 : f32
    %cst_26 = arith.constant 1.000000e+00 : f32
    %48 = vector.broadcast %cst_25 : f32 to vector<16x216xf32>
    %49 = arith.maximumf %48, %47 : vector<16x216xf32>
    %50 = vector.broadcast %cst_26 : f32 to vector<16x216xf32>
    %51 = arith.minimumf %50, %49 : vector<16x216xf32>
    %cst_27 = arith.constant 0.797884583 : f32
    %52 = vector.broadcast %cst_27 : f32 to vector<16x216xf32>
    %53 = arith.mulf %52, %51 : vector<16x216xf32>
    %cst_28 = arith.constant 4.471500e-02 : f32
    %54 = vector.broadcast %cst_28 : f32 to vector<16x216xf32>
    %55 = arith.mulf %54, %51 : vector<16x216xf32>
    %56 = arith.mulf %55, %51 : vector<16x216xf32>
    %cst_29 = arith.constant 1.000000e+00 : f32
    %57 = vector.broadcast %cst_29 : f32 to vector<16x216xf32>
    %58 = arith.addf %57, %56 : vector<16x216xf32>
    %59 = arith.mulf %53, %58 : vector<16x216xf32>
    %cst_30 = arith.constant 5.000000e-01 : f32
    %60 = vector.broadcast %cst_30 : f32 to vector<16x216xf32>
    %61 = arith.mulf %51, %60 : vector<16x216xf32>
    %62 = math.tanh %59 : vector<16x216xf32>
    %cst_31 = arith.constant 1.000000e+00 : f32
    %63 = vector.broadcast %cst_31 : f32 to vector<16x216xf32>
    %64 = arith.addf %63, %62 : vector<16x216xf32>
    %65 = arith.mulf %61, %64 : vector<16x216xf32>
    %c1_32 = arith.constant 1 : index
    %c0_33 = arith.constant 0 : index
    %c0_34 = arith.constant 0 : index
    %66 = vector.load %arg5[%c1_32, %c0_33, %c0_34] : memref<2x16x216xf32, #tpu.memory_space<vmem>>, vector<1x16x216xf32>
    %67 = vector.shape_cast %66 : vector<1x16x216xf32> to vector<16x216xf32>
    %68 = vector.shape_cast %65 : vector<16x216xf32> to vector<1x16x216xf32>
    tpu.vector_store %arg5[%c1_32, %c0_33, %c0_34], %68 {strides = array<i32>} : memref<2x16x216xf32, #tpu.memory_space<vmem>>, vector<1x16x216xf32>,
    return
  }
  func.func @transform_0(%arg0: i32) -> (i32, i32) {
    %c0_i32 = arith.constant 0 : i32
    %c0_i32_0 = arith.constant 0 : i32
    %c0_i32_1 = arith.constant 0 : i32
    return %c0_i32, %c0_i32_0 : i32, i32
  }
  func.func @transform_1(%arg0: i32) -> (i32, i32) {
    %c0_i32 = arith.constant 0 : i32
    %c0_i32_0 = arith.constant 0 : i32
    %c0_i32_1 = arith.constant 0 : i32
    return %c0_i32, %c0_i32_0 : i32, i32
  }
  func.func @transform_2(%arg0: i32) -> (i32, i32) {
    %c0_i32 = arith.constant 0 : i32
    %c0_i32_0 = arith.constant 0 : i32
    %c0_i32_1 = arith.constant 0 : i32
    return %c0_i32, %c0_i32_0 : i32, i32
  }
  func.func @transform_3(%arg0: i32) -> (i32, i32, i32) {
    %c0_i32 = arith.constant 0 : i32
    %c0_i32_0 = arith.constant 0 : i32
    %c0_i32_1 = arith.constant 0 : i32
    return %arg0, %c0_i32, %c0_i32_0 : i32, i32, i32
  }
  func.func @transform_4(%arg0: i32) -> (i32, i32, i32) {
    %c0_i32 = arith.constant 0 : i32
    %c0_i32_0 = arith.constant 0 : i32
    %c0_i32_1 = arith.constant 0 : i32
    return %arg0, %c0_i32, %c0_i32_0 : i32, i32, i32
  }
}

</mosaic_0001>

<llo_original>
// kernel: conv3d_post_process.1
$region0: #{conv3d_post_process.1}
  #allocation0 [shape = 'u32[]', space=smem, size = 0x4, offset = 0x4, fixed_abs, tag = 'smem constant byte address 0x4 - core index']
  #allocation1 [shape = 'u32[72,128]{1,0:T(1,128)}', space=vmem, size = 0x9000, scoped, tag = 'internal scratch']
  %s0 = inlined_call_operand.vmem [shape: bf16[16,81], index: 0, kind: input, shape index: {}]
  %s1 = inlined_call_operand.vmem [shape: f32[16,1], index: 1, kind: input, shape index: {}]
  %s2 = inlined_call_operand.vmem [shape: f32[16,1], index: 2, kind: input, shape index: {}]
  %s3 = inlined_call_operand.vmem [shape: bf16[2,81,216], index: 3, kind: input, shape index: {}]
  %s4 = inlined_call_operand.vmem [shape: f32[2,16,216], index: 4, kind: output, shape index: {}]
  %s5 = sld [smem:[#allocation0]]
  $region26: #{conv3d_post_process.1} parent=0
    _
  %s7 = ssub.s32 1, %s5
  %s8 = scalar_select 0, %s7, %s5
  // Predicated region
  $region2: #{conv3d_post_process.1} parent=0 // pred_check
    _
  $region3: #{conv3d_post_process.1} parent=0 // pred_check_branch
    %10 = sbr.rel (0) target = $region5
  $region4: #{conv3d_post_process.1} parent=0 // pred_region
    _
  $region5: #{conv3d_post_process.1} parent=0 // pred_fallthru
    _
  // Predicated region
  $region6: #{conv3d_post_process.1} parent=0 // pred_check
    _
  $region7: #{conv3d_post_process.1} parent=0 // pred_check_branch
    %12 = sbr.rel (0) target = $region9
  $region8: #{conv3d_post_process.1} parent=0 // pred_region
    _
  $region9: #{conv3d_post_process.1} parent=0 // pred_fallthru
    _
  // Predicated region
  $region10: #{conv3d_post_process.1} parent=0 // pred_check
    _
  $region11: #{conv3d_post_process.1} parent=0 // pred_check_branch
    %14 = sbr.rel (0) target = $region13
  $region12: #{conv3d_post_process.1} parent=0 // pred_region
    _
  $region13: #{conv3d_post_process.1} parent=0 // pred_fallthru
    _
  // Predicated region
  $region14: #{conv3d_post_process.1} parent=0 // pred_check
    _
  $region15: #{conv3d_post_process.1} parent=0 // pred_check_branch
    %16 = sbr.rel (0) target = $region17
  $region16: #{conv3d_post_process.1} parent=0 // pred_region
    _
  $region17: #{conv3d_post_process.1} parent=0 // pred_fallthru
    _
  %v18 = vld [vmem:[%s0] sm:$0xf]
  %v19 = vld [vmem:[%s0 + $0x4] sm:$0xf]
  %v20 = vld [vmem:[%s1] sm:$0xff]
  %v21 = vld [vmem:[%s1 + $0x8] sm:$0xff]
  %v22 = vld [vmem:[%s2] sm:$0xff]
  %v23 = vld [vmem:[%s2 + $0x8] sm:$0xff]
  %v24 = vld [vmem:[%s3] sm:$0xff]
  %v25 = vld [vmem:[%s3 + $0x8] sm:$0xff]
  %v26 = vld [vmem:[%s3 + $0x10] sm:$0xff]
  %v27 = vld [vmem:[%s3 + $0x18] sm:$0xff]
  %v28 = vld [vmem:[%s3 + $0x20] sm:$0xff]
  %v29 = vld [vmem:[%s3 + $0x28] sm:$0xff]
  %v30 = vld [vmem:[%s3 + $0x30] sm:$0xff]
  %v31 = vld [vmem:[%s3 + $0x38] sm:$0xff]
  %v32 = vld [vmem:[%s3 + $0x40] sm:$0xff]
  %v33 = vld [vmem:[%s3 + $0x48] sm:$0xff]
  %v34 = vld [vmem:[%s3 + $0x50] sm:$0x11]
  %36 = vset.pattern.permute.xlu0 0
  %37 = vperm.xlu0 %36, %v20
  %v38 = vpop.permute.xlu0 %37
  %41 = vset.pattern.permute.xlu0 0
  %42 = vperm.xlu0 %41, %v21
  %v43 = vpop.permute.xlu0 %42
  %v47 = vunpack.c.l.b16 %v18
  %v48 = vunpack.c.l.b16 %v19
  %v49 = vpack.c.b16 %v48, %v47
  %v61 = vunpack.c.l.b16 %v24
  %v62 = vunpack.c.h.b16 %v24
  %v63 = vunpack.c.l.b16 %v25
  %v64 = vunpack.c.h.b16 %v25
  %v65 = vunpack.c.l.b16 %v26
  %v66 = vunpack.c.h.b16 %v26
  %v67 = vunpack.c.l.b16 %v27
  %v68 = vunpack.c.h.b16 %v27
  %v69 = vunpack.c.l.b16 %v28
  %v70 = vunpack.c.h.b16 %v28
  %v71 = vunpack.c.l.b16 %v29
  %v72 = vunpack.c.h.b16 %v29
  %v73 = vunpack.c.l.b16 %v30
  %v74 = vunpack.c.h.b16 %v30
  %v75 = vunpack.c.l.b16 %v31
  %v76 = vunpack.c.h.b16 %v31
  %v77 = vunpack.c.l.b16 %v32
  %v78 = vunpack.c.h.b16 %v32
  %v79 = vunpack.c.l.b16 %v33
  %v80 = vunpack.c.h.b16 %v33
  %v81 = vunpack.c.l.b16 %v34
  %v82 = vunpack.c.h.b16 %v34
  %v83 = vpack.c.b16 %v63, %v61
  %v84 = vpack.c.b16 %v64, %v62
  %v85 = vpack.c.b16 %v67, %v65
  %v86 = vpack.c.b16 %v68, %v66
  %v87 = vpack.c.b16 %v71, %v69
  %v88 = vpack.c.b16 %v72, %v70
  %v89 = vpack.c.b16 %v75, %v73
  %v90 = vpack.c.b16 %v76, %v74
  %v91 = vpack.c.b16 %v79, %v77
  %v92 = vpack.c.b16 %v80, %v78
  %v93 = vpack.c.b16 %v81, %v81
  %v94 = vpack.c.b16 %v82, %v82
  %vm105 = vcmask 662528
  %v107 = vsel %vm105, %v49, 0
  %vm109 = vcmask 1040384
  %v110 = vsel 0, 4294967295, 65535
  %v111 = vsel %vm109, %v110, 0
  %v113 = vand.u32 %v93, %v111
  %v116 = vand.u32 %v94, %v111
  %118 = vmatpush.bf16.msra.mxu0 0
  %119 = vmatpush.bf16.msra.mxu0 0
  %120 = vmatpush.bf16.msra.mxu0 %v113
  %121 = vmatpush.bf16.msra.mxu0 %v91
  %122 = vmatpush.bf16.msra.mxu0 %v89
  %123 = vmatpush.bf16.msra.mxu0 %v87
  %124 = vmatpush.bf16.msra.mxu0 %v85
  %125 = vmatpush.bf16.msra.mxu0 %v83
  %126 = vmatmul.bf16.gmra.mxu0 %v107
  %v127 = vpop.f32.mrf.mxu0
  %v128 = vadd.f32 %v38, %v127
  %v129 = vpop.f32.mrf.mxu0
  %v130 = vadd.f32 %v43, %v129
  %131 = vdwg.mxu0
  %132 = vmatpush.bf16.msra.mxu0 0
  %133 = vmatpush.bf16.msra.mxu0 0
  %134 = vmatpush.bf16.msra.mxu0 %v116
  %135 = vmatpush.bf16.msra.mxu0 %v92
  %136 = vmatpush.bf16.msra.mxu0 %v90
  %137 = vmatpush.bf16.msra.mxu0 %v88
  %138 = vmatpush.bf16.msra.mxu0 %v86
  %139 = vmatpush.bf16.msra.mxu0 %v84
  %140 = vmatmul.bf16.gmra.mxu0 %v107
  %v141 = vpop.f32.mrf.mxu0
  %v142 = vadd.f32 %v38, %v141
  %v143 = vpop.f32.mrf.mxu0
  %v144 = vadd.f32 %v43, %v143
  %145 = vdwg.mxu0
  %vm146 = vcmp.gt.f32.partialorder %v128, 0.0
  %vm147 = vcmp.gt.f32.partialorder %v142, 0.0
  %vm148 = vcmp.gt.f32.partialorder %v130, 0.0
  %vm149 = vcmp.gt.f32.partialorder %v144, 0.0
  %v150 = vmul.f32 %v128, 0.2
  %v151 = vmul.f32 %v142, 0.2
  %v152 = vmul.f32 %v130, 0.2
  %v153 = vmul.f32 %v144, 0.2
  %v154 = vsel %vm146, %v128, %v150
  %v155 = vsel %vm147, %v142, %v151
  %v156 = vsel %vm148, %v130, %v152
  %v157 = vsel %vm149, %v144, %v153
  %159 = vset.pattern.permute.xlu0 0
  %160 = vperm.xlu0 %159, %v22
  %v161 = vpop.permute.xlu0 %160
  %164 = vset.pattern.permute.xlu0 0
  %165 = vperm.xlu0 %164, %v23
  %v166 = vpop.permute.xlu0 %165
  %v168 = vadd.f32 %v154, %v161
  %v169 = vadd.f32 %v155, %v161
  %v170 = vadd.f32 %v156, %v166
  %v171 = vadd.f32 %v157, %v166
  %v172 = vmax.f32 %v168, -1.0
  %v173 = vmax.f32 %v169, -1.0
  %v174 = vmax.f32 %v170, -1.0
  %v175 = vmax.f32 %v171, -1.0
  %v176 = vmin.f32 %v172, 1.0
  %v177 = vmin.f32 %v173, 1.0
  %v178 = vmin.f32 %v174, 1.0
  %v179 = vmin.f32 %v175, 1.0
  %v180 = vmul.f32 %v176, 0.7978846
  %v181 = vmul.f32 %v177, 0.7978846
  %v182 = vmul.f32 %v178, 0.7978846
  %v183 = vmul.f32 %v179, 0.7978846
  %v184 = vmul.f32 %v176, 0.044715
  %v185 = vmul.f32 %v177, 0.044715
  %v186 = vmul.f32 %v178, 0.044715
  %v187 = vmul.f32 %v179, 0.044715
  %v188 = vmul.f32 %v184, %v176
  %v189 = vmul.f32 %v185, %v177
  %v190 = vmul.f32 %v186, %v178
  %v191 = vmul.f32 %v187, %v179
  %v192 = vadd.f32 %v188, 1.0
  %v193 = vadd.f32 %v189, 1.0
  %v194 = vadd.f32 %v190, 1.0
  %v195 = vadd.f32 %v191, 1.0
  %v196 = vmul.f32 %v180, %v192
  %v197 = vmul.f32 %v181, %v193
  %v198 = vmul.f32 %v182, %v194
  %v199 = vmul.f32 %v183, %v195
  %v200 = vmul.f32 %v176, 0.5
  %v201 = vmul.f32 %v177, 0.5
  %v202 = vmul.f32 %v178, 0.5
  %v203 = vmul.f32 %v179, 0.5
  %v204 = vtanh.pop %v196
  %v205 = vtanh.pop %v197
  %v206 = vtanh.pop %v198
  %v207 = vtanh.pop %v199
  %v208 = vadd.f32 %v204, 1.0
  %v209 = vadd.f32 %v205, 1.0
  %v210 = vadd.f32 %v206, 1.0
  %v211 = vadd.f32 %v207, 1.0
  %v212 = vmul.f32 %v200, %v208
  %v213 = vmul.f32 %v201, %v209
  %v214 = vmul.f32 %v202, %v210
  %v215 = vmul.f32 %v203, %v211
  %216 = vst [vmem:[%s4] sm:$0xff] %v212
  %vm217 = vcmask 719872
  %218 = vst.msk [vmem:[%s4 + $0x8] sm:$0xff] %vm217, %v213
  %219 = vst [vmem:[%s4 + $0x10] sm:$0xff] %v214
  %220 = vst.msk [vmem:[%s4 + $0x18] sm:$0xff] %vm217, %v215
  %s221 = scalar_lea.vmem %s3, 88
  %v222 = vld [vmem:[%s221] sm:$0xff]
  %v223 = vld [vmem:[%s221 + $0x8] sm:$0xff]
  %v224 = vld [vmem:[%s221 + $0x10] sm:$0xff]
  %v225 = vld [vmem:[%s221 + $0x18] sm:$0xff]
  %v226 = vld [vmem:[%s221 + $0x20] sm:$0xff]
  %v227 = vld [vmem:[%s221 + $0x28] sm:$0xff]
  %v228 = vld [vmem:[%s221 + $0x30] sm:$0xff]
  %v229 = vld [vmem:[%s221 + $0x38] sm:$0xff]
  %v230 = vld [vmem:[%s221 + $0x40] sm:$0xff]
  %v231 = vld [vmem:[%s221 + $0x48] sm:$0xff]
  %v232 = vld [vmem:[%s221 + $0x50] sm:$0x11]
  %v244 = vunpack.c.l.b16 %v222
  %v245 = vunpack.c.h.b16 %v222
  %v246 = vunpack.c.l.b16 %v223
  %v247 = vunpack.c.h.b16 %v223
  %v248 = vunpack.c.l.b16 %v224
  %v249 = vunpack.c.h.b16 %v224
  %v250 = vunpack.c.l.b16 %v225
  %v251 = vunpack.c.h.b16 %v225
  %v252 = vunpack.c.l.b16 %v226
  %v253 = vunpack.c.h.b16 %v226
  %v254 = vunpack.c.l.b16 %v227
  %v255 = vunpack.c.h.b16 %v227
  %v256 = vunpack.c.l.b16 %v228
  %v257 = vunpack.c.h.b16 %v228
  %v258 = vunpack.c.l.b16 %v229
  %v259 = vunpack.c.h.b16 %v229
  %v260 = vunpack.c.l.b16 %v230
  %v261 = vunpack.c.h.b16 %v230
  %v262 = vunpack.c.l.b16 %v231
  %v263 = vunpack.c.h.b16 %v231
  %v264 = vunpack.c.l.b16 %v232
  %v265 = vunpack.c.h.b16 %v232
  %v266 = vpack.c.b16 %v246, %v244
  %v267 = vpack.c.b16 %v247, %v245
  %v268 = vpack.c.b16 %v250, %v248
  %v269 = vpack.c.b16 %v251, %v249
  %v270 = vpack.c.b16 %v254, %v252
  %v271 = vpack.c.b16 %v255, %v253
  %v272 = vpack.c.b16 %v258, %v256
  %v273 = vpack.c.b16 %v259, %v257
  %v274 = vpack.c.b16 %v262, %v260
  %v275 = vpack.c.b16 %v263, %v261
  %v276 = vpack.c.b16 %v264, %v264
  %v277 = vpack.c.b16 %v265, %v265
  %v289 = vand.u32 %v276, %v111
  %v292 = vand.u32 %v277, %v111
  %294 = vmatpush.bf16.msra.mxu0 0
  %295 = vmatpush.bf16.msra.mxu0 0
  %296 = vmatpush.bf16.msra.mxu0 %v289
  %297 = vmatpush.bf16.msra.mxu0 %v274
  %298 = vmatpush.bf16.msra.mxu0 %v272
  %299 = vmatpush.bf16.msra.mxu0 %v270
  %300 = vmatpush.bf16.msra.mxu0 %v268
  %301 = vmatpush.bf16.msra.mxu0 %v266
  %302 = vmatmul.bf16.gmra.mxu0 %v107
  %v303 = vpop.f32.mrf.mxu0
  %v304 = vadd.f32 %v38, %v303
  %v305 = vpop.f32.mrf.mxu0
  %v306 = vadd.f32 %v43, %v305
  %307 = vdwg.mxu0
  %308 = vmatpush.bf16.msra.mxu0 0
  %309 = vmatpush.bf16.msra.mxu0 0
  %310 = vmatpush.bf16.msra.mxu0 %v292
  %311 = vmatpush.bf16.msra.mxu0 %v275
  %312 = vmatpush.bf16.msra.mxu0 %v273
  %313 = vmatpush.bf16.msra.mxu0 %v271
  %314 = vmatpush.bf16.msra.mxu0 %v269
  %315 = vmatpush.bf16.msra.mxu0 %v267
  %316 = vmatmul.bf16.gmra.mxu0 %v107
  %v317 = vpop.f32.mrf.mxu0
  %v318 = vadd.f32 %v38, %v317
  %v319 = vpop.f32.mrf.mxu0
  %v320 = vadd.f32 %v43, %v319
  %321 = vdwg.mxu0
  %vm322 = vcmp.gt.f32.partialorder %v304, 0.0
  %vm323 = vcmp.gt.f32.partialorder %v318, 0.0
  %vm324 = vcmp.gt.f32.partialorder %v306, 0.0
  %vm325 = vcmp.gt.f32.partialorder %v320, 0.0
  %v326 = vmul.f32 %v304, 0.2
  %v327 = vmul.f32 %v318, 0.2
  %v328 = vmul.f32 %v306, 0.2
  %v329 = vmul.f32 %v320, 0.2
  %v330 = vsel %vm322, %v304, %v326
  %v331 = vsel %vm323, %v318, %v327
  %v332 = vsel %vm324, %v306, %v328
  %v333 = vsel %vm325, %v320, %v329
  %v334 = vadd.f32 %v330, %v161
  %v335 = vadd.f32 %v331, %v161
  %v336 = vadd.f32 %v332, %v166
  %v337 = vadd.f32 %v333, %v166
  %v338 = vmax.f32 %v334, -1.0
  %v339 = vmax.f32 %v335, -1.0
  %v340 = vmax.f32 %v336, -1.0
  %v341 = vmax.f32 %v337, -1.0
  %v342 = vmin.f32 %v338, 1.0
  %v343 = vmin.f32 %v339, 1.0
  %v344 = vmin.f32 %v340, 1.0
  %v345 = vmin.f32 %v341, 1.0
  %v346 = vmul.f32 %v342, 0.7978846
  %v347 = vmul.f32 %v343, 0.7978846
  %v348 = vmul.f32 %v344, 0.7978846
  %v349 = vmul.f32 %v345, 0.7978846
  %v350 = vmul.f32 %v342, 0.044715
  %v351 = vmul.f32 %v343, 0.044715
  %v352 = vmul.f32 %v344, 0.044715
  %v353 = vmul.f32 %v345, 0.044715
  %v354 = vmul.f32 %v350, %v342
  %v355 = vmul.f32 %v351, %v343
  %v356 = vmul.f32 %v352, %v344
  %v357 = vmul.f32 %v353, %v345
  %v358 = vadd.f32 %v354, 1.0
  %v359 = vadd.f32 %v355, 1.0
  %v360 = vadd.f32 %v356, 1.0
  %v361 = vadd.f32 %v357, 1.0
  %v362 = vmul.f32 %v346, %v358
  %v363 = vmul.f32 %v347, %v359
  %v364 = vmul.f32 %v348, %v360
  %v365 = vmul.f32 %v349, %v361
  %v366 = vmul.f32 %v342, 0.5
  %v367 = vmul.f32 %v343, 0.5
  %v368 = vmul.f32 %v344, 0.5
  %v369 = vmul.f32 %v345, 0.5
  %v370 = vtanh.pop %v362
  %v371 = vtanh.pop %v363
  %v372 = vtanh.pop %v364
  %v373 = vtanh.pop %v365
  %v374 = vadd.f32 %v370, 1.0
  %v375 = vadd.f32 %v371, 1.0
  %v376 = vadd.f32 %v372, 1.0
  %v377 = vadd.f32 %v373, 1.0
  %v378 = vmul.f32 %v366, %v374
  %v379 = vmul.f32 %v367, %v375
  %v380 = vmul.f32 %v368, %v376
  %v381 = vmul.f32 %v369, %v377
  %s382 = scalar_lea.vmem %s4, 32
  %383 = vst [vmem:[%s382] sm:$0xff] %v378
  %384 = vst.msk [vmem:[%s382 + $0x8] sm:$0xff] %vm217, %v379
  %385 = vst [vmem:[%s382 + $0x10] sm:$0xff] %v380
  %386 = vst.msk [vmem:[%s382 + $0x18] sm:$0xff] %vm217, %v381
  // Predicated region
  $region18: #{conv3d_post_process.1} parent=0 // pred_check
    _
  $region19: #{conv3d_post_process.1} parent=0 // pred_check_branch
    %388 = sbr.rel (0) target = $region21
  $region20: #{conv3d_post_process.1} parent=0 // pred_region
    _
  $region21: #{conv3d_post_process.1} parent=0 // pred_fallthru
    _
  // Predicated region
  $region22: #{conv3d_post_process.1} parent=0 // pred_check
    _
  $region23: #{conv3d_post_process.1} parent=0 // pred_check_branch
    %390 = sbr.rel (0) target = $region25
  $region24: #{conv3d_post_process.1} parent=0 // pred_region
    _
  $region25: #{conv3d_post_process.1} parent=0 // pred_fallthru
    _

</llo_original>
